<compile_context>
chip_gen: v5e
topology: v5e:2x2
jax: 0.10.0
libtpu: 0.0.40
codegen_flags: <defaults>
</compile_context>

<pallas_src>
import jax
import jax.numpy as jnp
from jax.experimental import pallas as pl
from jax.experimental.pallas import tpu as pltpu

LANES = 128

_ARBITRARY = getattr(pltpu, "ARBITRARY", "arbitrary")
_PARALLEL = getattr(pltpu, "PARALLEL", "parallel")
_CORE_PARALLEL = getattr(pltpu, "CORE_PARALLEL", _PARALLEL)


def _round_up(x: int, m: int) -> int:
    return ((x + m - 1) // m) * m


def _device_kind() -> str:
    try:
        return jax.devices()[0].device_kind.lower()
    except Exception:
        return ""


def _default_block_rows_cap() -> int:
    kind = _device_kind()
    if "v6" in kind or "v7" in kind or "tpu7" in kind or "trillium" in kind:
        # 8192 rows -> 4 MiB / input / buffer -> 16 MiB double-buffered inputs
        # (fits the 32 MiB default scoped VMEM on v6e and v7x).
        return 8192
    # v5e (and unknown chips): 16 MiB default scoped VMEM -> 4096 rows.
    return 4096


def _is_v7() -> bool:
    kind = _device_kind()
    return "v7" in kind or "tpu7" in kind or "tpu 7" in kind


def _default_num_shards() -> int:
    # Only v7x has 2 TensorCores per chip; on v5e/v6e a shard axis is just a
    # serial loop (pure overhead).
    return 2 if _is_v7() else 1


def _make_l1_kernel(rows, block_rows, inner_steps, num_blocks, mask_last):
    groups = block_rows // 8

    def tile_partial(diff):
        # Sublane-preserving split reduce: (block_rows,128)->(groups,8,128),
        # sum over groups on the VALU -> one (8,128) vreg.
        return diff.reshape(groups, 8, LANES).sum(axis=0)

    def kernel(x_ref, y_ref, o_ref):
        i = pl.program_id(1)

        @pl.when(i == 0)
        def _():
            o_ref[...] = jnp.zeros_like(o_ref)

        diff = jnp.abs(x_ref[...].astype(jnp.float32)
                       - y_ref[...].astype(jnp.float32))

        if not mask_last:
            # Fast path: every block is fully valid.
            o_ref[...] += tile_partial(diff)
        else:
            blk = pl.program_id(0) * inner_steps + i
            is_edge = blk == num_blocks - 1

            @pl.when(jnp.logical_not(is_edge))
            def _():
                o_ref[...] += tile_partial(diff)

            @pl.when(is_edge)
            def _():
                # Select-based mask from a (block_rows, 1) column iota so the
                # garbage in Pallas' padded partial block contributes exactly
                # zero (even if it is NaN/Inf).
                row0 = blk * block_rows
                row_ids = row0 + jax.lax.broadcasted_iota(
                    jnp.int32, (block_rows, 1), 0)
                masked = jnp.where(row_ids < rows, diff, 0.0)
                o_ref[...] += tile_partial(masked)

    return kernel


def cycle_loss(sample: jax.Array, cycled_sample: jax.Array, *,
               max_block_rows: int | None = None,
               num_shards: int | None = None) -> jax.Array:
    """L1 (mean absolute error) between sample and cycled_sample.

    Equivalent to torch.nn.L1Loss()(sample, cycled_sample); returns a float32
    scalar.
    """
    assert sample.shape == cycled_sample.shape
    n_elems = sample.size

    x = sample.reshape(-1)
    y = cycled_sample.reshape(-1)

    rows = n_elems // LANES
    n_main = rows * LANES

    # <=127 leftover elements handled outside the kernel (no padded HBM copy).
    if n_main != n_elems:
        tail_sum = jnp.sum(jnp.abs(x[n_main:].astype(jnp.float32)
                                   - y[n_main:].astype(jnp.float32)))
    else:
        tail_sum = jnp.float32(0.0)

    if rows == 0:
        return tail_sum / jnp.float32(n_elems)

    x2 = x[:n_main].reshape(rows, LANES)
    y2 = y[:n_main].reshape(rows, LANES)

    cap = max_block_rows if max_block_rows is not None else _default_block_rows_cap()
    cap = max(8, _round_up(int(cap), 8))
    shards = int(num_shards) if num_shards is not None else _default_num_shards()
    shards = max(1, shards)

    block_rows = min(cap, _round_up(rows, 8))
    if shards > 1:
        if pl.cdiv(rows, block_rows) < shards:
            shards = 1
        else:
            # Force num_blocks to be an exact multiple of the shard count so
            # no shard ever re-reads a clamped duplicate block from HBM.
            while pl.cdiv(rows, block_rows) % shards != 0 and block_rows > 8:
                block_rows -= 8
            if pl.cdiv(rows, block_rows) % shards != 0:
                shards = 1
                block_rows = min(cap, _round_up(rows, 8))

    num_blocks = pl.cdiv(rows, block_rows)
    inner_steps = num_blocks // shards
    mask_last = (rows % block_rows) != 0

    kernel = _make_l1_kernel(rows, block_rows, inner_steps, num_blocks, mask_last)

    def in_map(s, i):
        return (s * inner_steps + i, 0)

    def run(dim_sems):
        return pl.pallas_call(
            kernel,
            out_shape=jax.ShapeDtypeStruct((shards, 8, LANES), jnp.float32),
            grid_spec=pltpu.PrefetchScalarGridSpec(
                num_scalar_prefetch=0,
                grid=(shards, inner_steps),
                in_specs=[
                    pl.BlockSpec((block_rows, LANES), in_map),
                    pl.BlockSpec((block_rows, LANES), in_map),
                ],
                # One (8,128) output tile per shard: tile-disjoint, lane-dense
                # writebacks; the block is resident across the reduction axis
                # and doubles as the accumulator.
                out_specs=pl.BlockSpec((None, 8, LANES), lambda s, i: (s, 0, 0)),
            ),
            compiler_params=pltpu.CompilerParams(dimension_semantics=dim_sems),
        )(x2, y2)

    if shards == 1:
        candidates = [(_ARBITRARY, _ARBITRARY)]
    elif _is_v7():
        # True per-core split of the HBM stream on v7x; fall back to plain
        # "parallel" if CORE_PARALLEL is rejected by this jax/libtpu combo.
        candidates = [(_CORE_PARALLEL, _ARBITRARY), (_PARALLEL, _ARBITRARY)]
    else:
        candidates = [(_PARALLEL, _ARBITRARY)]

    partials = None
    last_err = None
    for dims in candidates:
        try:
            partials = run(dims)
            break
        except Exception as e:  # fall back to the next dimension-semantics choice
            last_err = e
    if partials is None:
        raise last_err

    return (jnp.sum(partials) + tail_sum) / jnp.float32(n_elems)


class CycleLoss:
    """Thin stateful wrapper mirroring the PyTorch module interface."""

    def __init__(self):
        self.loss_value = None

    def __call__(self, sample: jax.Array, cycled_sample: jax.Array) -> jax.Array:
        loss = cycle_loss(sample, cycled_sample)
        self.loss_value = loss
        return loss


if __name__ == "__main__":
    key = jax.random.PRNGKey(0)

    def check(shape, k, **kw):
        k1, k2 = jax.random.split(k)
        a = jax.random.normal(k1, shape, dtype=jnp.float32)
        b = jax.random.normal(k2, shape, dtype=jnp.float32)
        loss = cycle_loss(a, b, **kw)
        jax.block_until_ready(loss)
        ref = jnp.mean(jnp.abs(a - b))
        assert jnp.allclose(loss, ref, rtol=1e-5, atol=1e-6), (shape, loss, ref)
        return loss

    k0, k1, k2, k3 = jax.random.split(key, 4)
    # StarGAN-style image batch (batch=2, channels=4, 16x16): single block.
    check((2, 4, 16, 16), k0)
    # Flat size not a multiple of 128: exercises the out-of-kernel tail fix-up.
    check((2, 3, 15, 15), k1)
    # Small forced block: multi-step reduction + gated edge-block mask + tail.
    check((2, 4, 18, 18), k2, max_block_rows=8)
    # Forced 2-shard grid: per-shard tile-disjoint outputs, even block split.
    check((2, 4, 32, 32), k3, max_block_rows=16, num_shards=2)

    # Module-style usage (stores loss_value like the PyTorch class).
    m = CycleLoss()
    ka, kb = jax.random.split(k0)
    out = m(jax.random.normal(ka, (2, 4, 16, 16), jnp.float32),
            jax.random.normal(kb, (2, 4, 16, 16), jnp.float32))
    jax.block_until_ready(out)

    print("KERNEL_OK")
</pallas_src>

<mosaic_0001>
module attributes {stable_mosaic.version = 11 : i64} {
  func.func @kernel(%arg0: i32, %arg1: i32, %arg2: memref<16x128xf32, #tpu.memory_space<vmem>>, %arg3: memref<16x128xf32, #tpu.memory_space<vmem>>, %arg4: memref<1x8x128xf32, #tpu.memory_space<vmem>>) attributes {dimension_semantics = [#tpu.dimension_semantics<arbitrary>, #tpu.dimension_semantics<arbitrary>], iteration_bounds = array<i64: 1, 1>, scalar_prefetch = 0 : i64, scratch_operands = 0 : i64, tpu.core_type = #tpu.core_type<tc>, window_params = [{transform_indices = @transform_0, window_bounds = array<i64: 16, 128>}, {transform_indices = @transform_1, window_bounds = array<i64: 16, 128>}, {transform_indices = @transform_2, window_bounds = array<i64: 1, 8, 128>}]} {
    %c0_i32 = arith.constant 0 : i32
    %0 = arith.cmpi eq, %arg1, %c0_i32 : i32
    %1 = arith.extui %0 : i1 to i32
    %c0_i32_0 = arith.constant 0 : i32
    %2 = arith.cmpi ne, %1, %c0_i32_0 : i32
    scf.if %2 {
      %cst_10 = arith.constant 0.000000e+00 : f32
      %15 = vector.broadcast %cst_10 : f32 to vector<8x128xf32>
      %c0_11 = arith.constant 0 : index
      %c0_12 = arith.constant 0 : index
      %c0_13 = arith.constant 0 : index
      %16 = vector.load %arg4[%c0_11, %c0_12, %c0_13] : memref<1x8x128xf32, #tpu.memory_space<vmem>>, vector<1x8x128xf32>
      %17 = vector.shape_cast %16 : vector<1x8x128xf32> to vector<8x128xf32>
      %18 = vector.shape_cast %15 : vector<8x128xf32> to vector<1x8x128xf32>
      tpu.vector_store %arg4[%c0_11, %c0_12, %c0_13], %18 {strides = array<i32>} : memref<1x8x128xf32, #tpu.memory_space<vmem>>, vector<1x8x128xf32>,
    } else {
    }
    %c0 = arith.constant 0 : index
    %c0_1 = arith.constant 0 : index
    %3 = vector.load %arg2[%c0, %c0_1] : memref<16x128xf32, #tpu.memory_space<vmem>>, vector<16x128xf32>
    %c0_2 = arith.constant 0 : index
    %c0_3 = arith.constant 0 : index
    %4 = vector.load %arg3[%c0_2, %c0_3] : memref<16x128xf32, #tpu.memory_space<vmem>>, vector<16x128xf32>
    %5 = arith.subf %3, %4 : vector<16x128xf32>
    %6 = math.absf %5 : vector<16x128xf32>
    %c0_4 = arith.constant 0 : index
    %c0_5 = arith.constant 0 : index
    %c0_6 = arith.constant 0 : index
    %7 = vector.load %arg4[%c0_4, %c0_5, %c0_6] : memref<1x8x128xf32, #tpu.memory_space<vmem>>, vector<1x8x128xf32>
    %8 = vector.shape_cast %7 : vector<1x8x128xf32> to vector<8x128xf32>
    %9 = vector.shape_cast %6 : vector<16x128xf32> to vector<2x8x128xf32>
    %cst = arith.constant dense<0.000000e+00> : vector<8x128xf32>
    %10 = vector.multi_reduction <add>, %9, %cst [0] : vector<2x8x128xf32> to vector<8x128xf32>
    %11 = arith.addf %8, %10 : vector<8x128xf32>
    %c0_7 = arith.constant 0 : index
    %c0_8 = arith.constant 0 : index
    %c0_9 = arith.constant 0 : index
    %12 = vector.load %arg4[%c0_7, %c0_8, %c0_9] : memref<1x8x128xf32, #tpu.memory_space<vmem>>, vector<1x8x128xf32>
    %13 = vector.shape_cast %12 : vector<1x8x128xf32> to vector<8x128xf32>
    %14 = vector.shape_cast %11 : vector<8x128xf32> to vector<1x8x128xf32>
    tpu.vector_store %arg4[%c0_7, %c0_8, %c0_9], %14 {strides = array<i32>} : memref<1x8x128xf32, #tpu.memory_space<vmem>>, vector<1x8x128xf32>,
    return
  }
  func.func @transform_0(%arg0: i32, %arg1: i32) -> (i32, i32) {
    %c1_i32 = arith.constant 1 : i32
    %0 = arith.muli %arg0, %c1_i32 : i32
    %1 = arith.addi %0, %arg1 : i32
    %c0_i32 = arith.constant 0 : i32
    %c0_i32_0 = arith.constant 0 : i32
    return %1, %c0_i32 : i32, i32
  }
  func.func @transform_1(%arg0: i32, %arg1: i32) -> (i32, i32) {
    %c1_i32 = arith.constant 1 : i32
    %0 = arith.muli %arg0, %c1_i32 : i32
    %1 = arith.addi %0, %arg1 : i32
    %c0_i32 = arith.constant 0 : i32
    %c0_i32_0 = arith.constant 0 : i32
    return %1, %c0_i32 : i32, i32
  }
  func.func @transform_2(%arg0: i32, %arg1: i32) -> (i32, i32, i32) {
    %c0_i32 = arith.constant 0 : i32
    %c0_i32_0 = arith.constant 0 : i32
    %c0_i32_1 = arith.constant 0 : i32
    return %arg0, %c0_i32, %c0_i32_0 : i32, i32, i32
  }
}

</mosaic_0001>

<llo_original>
// kernel: tpu_custom_call.1
$region0: #{tpu_custom_call.1}
  #allocation0 [shape = 'u32[]', space=smem, size = 0x4, offset = 0x4, fixed_abs, tag = 'smem constant byte address 0x4 - core index']
  #allocation1 [shape = 'u32[72,128]{1,0:T(1,128)}', space=vmem, size = 0x9000, scoped, tag = 'internal scratch']
  %s0 = inlined_call_operand.hbm [shape: f32[16,128], index: 0, kind: input, shape index: {}]
  %s1 = inlined_call_operand.hbm [shape: f32[16,128], index: 1, kind: input, shape index: {}]
  %s2 = inlined_call_operand.hbm [shape: f32[1,8,128], index: 2, kind: output, shape index: {}]
  %s3 = sld [smem:[#allocation0]]
  $region30: #{tpu_custom_call.1} parent=0
    _
  %s5 = ssub.s32 1, %s3
  %s6 = scalar_select 0, %s5, %s3
  $region1: #{tpu_custom_call.1} parent=0
    #allocation2 [shape = 'u8[8192]{0}', space=vmem, size = 0x2000, scoped, tag = 'input window, operand 0, single buffered']
    #allocation3 [shape = 's32[1]{0}', space=sflag, size = 0x4, scoped, tag = 'scoped memory for tpu_custom_call.1']
    #allocation4 [shape = 's32[1]{0}', space=sflag, size = 0x4, scoped, tag = 'scoped memory for tpu_custom_call.1']
    #allocation5 [shape = 'u8[8192]{0}', space=vmem, size = 0x2000, scoped, tag = 'input window, operand 1, single buffered']
    #allocation6 [shape = 's32[1]{0}', space=sflag, size = 0x4, scoped, tag = 'scoped memory for tpu_custom_call.1']
    #allocation7 [shape = 'u8[4096]{0}', space=vmem, size = 0x1000, scoped, tag = 'output window, operand 0, single buffered']
    %7 = vsyncpa [#allocation3], 0
    %8 = vsyncpa [#allocation6], 0
    %9 = vsyncpa [#allocation4], 0
    // Predicated region
    $region2: #{tpu_custom_call.1} parent=1 // pred_check
      _
    $region3: #{tpu_custom_call.1} parent=1 // pred_check_branch
      %11 = sbr.rel (0) target = $region5
    $region4: #{tpu_custom_call.1} parent=1 // pred_region
      %s12 = sadd.s32 0, 0
      %s13 = smul.u32 2, %s12
      %15 = vsyncadd [#allocation3], 0
      %s16 = smul.addr %s13, 8
      %s17 = scalar_lea.hbm %s0, %s16
      %s18 = sshll.u32 %s17, 4
      %s19 = int_to_ptr.hbm [resolvable:$true] %s18
      %s20 = sshll.u32 [#allocation2], 4
      %s21 = int_to_ptr.vmem [resolvable:$true] %s20
      %26 = dma.hbm_to_vmem [thread:$0]  %s19, 256, %s21, [#allocation3], 128, 128, 8
    $region5: #{tpu_custom_call.1} parent=1 // pred_fallthru
      _
    // Predicated region
    $region6: #{tpu_custom_call.1} parent=1 // pred_check
      _
    $region7: #{tpu_custom_call.1} parent=1 // pred_check_branch
      %28 = sbr.rel (0) target = $region9
    $region8: #{tpu_custom_call.1} parent=1 // pred_region
      %s29 = sadd.s32 0, 0
      %s30 = smul.u32 2, %s29
      %32 = vsyncadd [#allocation6], 0
      %s33 = smul.addr %s30, 8
      %s34 = scalar_lea.hbm %s1, %s33
      %s35 = sshll.u32 %s34, 4
      %s36 = int_to_ptr.hbm [resolvable:$true] %s35
      %s37 = sshll.u32 [#allocation5], 4
      %s38 = int_to_ptr.vmem [resolvable:$true] %s37
      %43 = dma.hbm_to_vmem [thread:$0]  %s36, 256, %s38, [#allocation6], 128, 128, 8
    $region9: #{tpu_custom_call.1} parent=1 // pred_fallthru
      _
    // Predicated region
    $region10: #{tpu_custom_call.1} parent=1 // pred_check
      _
    $region11: #{tpu_custom_call.1} parent=1 // pred_check_branch
      %45 = sbr.rel (0) target = $region13
    $region12: #{tpu_custom_call.1} parent=1 // pred_region
      %47 = dma.done [#allocation3], 256
    $region13: #{tpu_custom_call.1} parent=1 // pred_fallthru
      _
    // Predicated region
    $region14: #{tpu_custom_call.1} parent=1 // pred_check
      _
    $region15: #{tpu_custom_call.1} parent=1 // pred_check_branch
      %49 = sbr.rel (0) target = $region17
    $region16: #{tpu_custom_call.1} parent=1 // pred_region
      %51 = dma.done [#allocation6], 256
    $region17: #{tpu_custom_call.1} parent=1 // pred_fallthru
      _
    %s52 = sadd.s32 0, 0
    %s53 = smul.u32 2, %s52
    %s54 = sadd.s32 0, 0
    %s55 = smul.u32 2, %s54
    %p56 = scmp.eq.s32.totalorder 0, 0
    // Predicated region
    $region18: #{tpu_custom_call.1} parent=1 // pred_check
      %p57 = pneg %p56
    $region19: #{tpu_custom_call.1} parent=1 // pred_check_branch
      %59 = sbr.rel (%p57) target = $region21
    $region20: #{tpu_custom_call.1} parent=1 // pred_region
      %60 = vst [vmem:[#allocation7] sm:$0xff] 0.0
    $region21: #{tpu_custom_call.1} parent=1 // pred_fallthru
      _
    %v61 = vld [vmem:[#allocation2] sm:$0xff]
    %v62 = vld [vmem:[#allocation2 + $0x8] sm:$0xff]
    %v63 = vld [vmem:[#allocation5] sm:$0xff]
    %v64 = vld [vmem:[#allocation5 + $0x8] sm:$0xff]
    %v65 = vsub.f32 %v61, %v63
    %v66 = vsub.f32 %v62, %v64
    %v67 = vand.u32 2147483647, %v65
    %v68 = vand.u32 2147483647, %v66
    %v69 = vld [vmem:[#allocation7] sm:$0xff]
    %v70 = vadd.f32 %v67, %v68
    %v71 = vadd.f32 %v69, %v70
    %72 = vst [vmem:[#allocation7] sm:$0xff] %v71
    // Predicated region
    $region22: #{tpu_custom_call.1} parent=1 // pred_check
      _
    $region23: #{tpu_custom_call.1} parent=1 // pred_check_branch
      %74 = sbr.rel (0) target = $region25
    $region24: #{tpu_custom_call.1} parent=1 // pred_region
      %76 = vsyncadd [#allocation4], 0
      %s78 = sshll.u32 [#allocation7], 4
      %s79 = int_to_ptr.vmem [resolvable:$true] %s78
      %s80 = sshll.u32 %s2, 4
      %s81 = int_to_ptr.hbm [resolvable:$true] %s80
      %83 = dma.vmem_to_hbm [thread:$0]  %s79, 128, %s81, [#allocation4]
    $region25: #{tpu_custom_call.1} parent=1 // pred_fallthru
      _
    // Predicated region
    $region26: #{tpu_custom_call.1} parent=1 // pred_check
      _
    $region27: #{tpu_custom_call.1} parent=1 // pred_check_branch
      %85 = sbr.rel (0) target = $region29
    $region28: #{tpu_custom_call.1} parent=1 // pred_region
      %87 = dma.done [#allocation4], 128
    $region29: #{tpu_custom_call.1} parent=1 // pred_fallthru
      _
    %88 = vsyncpa [#allocation3], 1
    %89 = vsyncpa [#allocation6], 1
    %90 = vsyncpa [#allocation4], 1

</llo_original>
